<compile_context>
chip_gen: v7x
topology: tpu7x:2x2x1
jax: 0.10.0
libtpu: 0.0.40
codegen_flags: <defaults>
</compile_context>

<pallas_src>
import functools

import jax
import jax.numpy as jnp
from jax import lax
from jax.experimental import pallas as pl
from jax.experimental.pallas import tpu as pltpu


# ---------------------------------------------------------------------------
# Activation table (f32 epilogue). Mirrors getattr(torch.nn, config.activation)().
# ---------------------------------------------------------------------------
_ACTIVATIONS = {
    "ReLU": lambda v: jnp.maximum(v, 0.0),
    "GELU": jax.nn.gelu,
    "SiLU": jax.nn.silu,
    "Tanh": jnp.tanh,
    "Sigmoid": jax.nn.sigmoid,
}


# ---------------------------------------------------------------------------
# Kernel: for each (i, j) grid step
#   h    = act(x_tile @ w1_tile^T + b1_tile)        [TM, TF]        (f32)
#   acc += h @ w2_tile^T                            [TM, d_model_p] (f32, VMEM-resident)
#   j == 0   : acc is pre-loaded with b2 (broadcast)
#   j == last: out = acc.astype(out_dtype)          (lane-dense full-width store)
# ---------------------------------------------------------------------------
def ffn_kernel(x_ref, w1_ref, b1_ref, w2_ref, b2_ref, o_ref, acc_ref, *, activation):
    j = pl.program_id(1)
    act_fn = _ACTIVATIONS[activation]

    @pl.when(j == 0)
    def _():
        # Fold the second bias into the accumulator init (saves a VALU pass at the end).
        acc_ref[...] = jnp.broadcast_to(b2_ref[...], acc_ref.shape).astype(jnp.float32)

    # First linear: contract the shared d_model axis (last dim of both operands),
    # i.e. x @ W1^T without materializing a transpose.
    h = lax.dot_general(
        x_ref[...], w1_ref[...],
        dimension_numbers=(((1,), (1,)), ((), ())),
        preferred_element_type=jnp.float32)
    # f32 epilogue: bias + activation.
    h = act_fn(h + b1_ref[...])

    # Second linear: contract the d_ff tile axis (last dim of both operands),
    # i.e. h @ W2^T, accumulated in f32.
    acc_ref[...] += lax.dot_general(
        h.astype(w2_ref.dtype), w2_ref[...],
        dimension_numbers=(((1,), (1,)), ((), ())),
        preferred_element_type=jnp.float32)

    @pl.when(j == pl.num_programs(1) - 1)
    def _():
        o_ref[...] = acc_ref[...].astype(o_ref.dtype)


# ---------------------------------------------------------------------------
# Wrapper
# ---------------------------------------------------------------------------
def _round_up(x, m):
    return ((x + m - 1) // m) * m


def _pick_tile(dim, candidates):
    for c in candidates:
        if dim % c == 0:
            return c
    return dim


def feed_forward(x, w1, b1, w2, b2, *, activation="ReLU",
                 compute_dtype=jnp.bfloat16, tm_target=256):
    """x: [batch, seq, d_model]
       w1: [d_ff, d_model]   b1: [d_ff]      (PyTorch nn.Linear(d_model, d_ff) layout)
       w2: [d_model, d_ff]   b2: [d_model]   (PyTorch nn.Linear(d_ff, d_model) layout)
       Returns [batch, seq, d_model] in x.dtype."""
    batch, seq, d_model = x.shape
    d_ff = w1.shape[0]
    assert w1.shape == (d_ff, d_model)
    assert w2.shape == (d_model, d_ff)
    assert activation in _ACTIVATIONS, f"unsupported activation {activation}"

    out_dtype = x.dtype
    M = batch * seq

    LANE = 128   # lane width: last dims multiples of 128 -> dense stores / full MXU tiles
    SUB = 16     # sublane packing for bf16 rows

    d_model_p = _round_up(d_model, LANE)
    d_ff_p = _round_up(d_ff, LANE)
    M_p = _round_up(M, SUB)

    # Row tile: cap at tm_target (256 matches the 256-wide MXU on v6e/v7x and keeps the
    # f32 accumulator + h tile small enough to double-buffer on v7x's 64 MiB VMEM).
    if M_p >= tm_target:
        TM = tm_target
        M_p = _round_up(M_p, TM)
    else:
        TM = M_p
    # d_ff tile: 512 is safe across v5e/v6e/v7x.
    TF = _pick_tile(d_ff_p, (512, 256, 128))

    # Pad (zeros in the padded region are exact no-ops through both matmuls and the
    # activation since act(0)=0 here is irrelevant: padded d_ff rows of w2 are zero)
    # and cast matmul operands to the MXU-native compute dtype. No weight transpose.
    cd = jnp.dtype(compute_dtype)
    x2d = jnp.pad(x.reshape(M, d_model),
                  ((0, M_p - M), (0, d_model_p - d_model))).astype(compute_dtype)
    w1p = jnp.pad(w1, ((0, d_ff_p - d_ff), (0, d_model_p - d_model))).astype(compute_dtype)
    w2p = jnp.pad(w2, ((0, d_model_p - d_model), (0, d_ff_p - d_ff))).astype(compute_dtype)
    b1p = jnp.pad(b1, (0, d_ff_p - d_ff)).astype(jnp.float32).reshape(1, d_ff_p)
    b2p = jnp.pad(b2, (0, d_model_p - d_model)).astype(jnp.float32).reshape(1, d_model_p)

    grid = (M_p // TM, d_ff_p // TF)

    # Estimate VMEM working set (double-buffered inputs/outputs + f32 accumulator + h tile)
    # and only raise the scoped limit when actually needed (keeps v7x's 64 MiB safe).
    out_bpe = jnp.dtype(out_dtype).itemsize
    vmem_est = (2 * TM * d_model_p * cd.itemsize        # x blocks
                + 2 * TF * d_model_p * cd.itemsize      # w1 blocks
                + 2 * d_model_p * TF * cd.itemsize      # w2 blocks
                + 2 * (TF + d_model_p) * 4              # bias blocks
                + 2 * TM * d_model_p * out_bpe          # out blocks
                + TM * d_model_p * 4                    # accumulator scratch
                + TM * TF * 4)                          # h tile (VMEM temp)
    cp_kwargs = {}
    if vmem_est > (24 << 20):
        cp_kwargs["vmem_limit_bytes"] = int(min(96 << 20, _round_up(2 * vmem_est, 1 << 20)))

    cost = pl.CostEstimate(
        flops=4 * M_p * d_model_p * d_ff_p,             # two matmuls, 2 flops/MAC
        transcendentals=0,
        bytes_accessed=int(x2d.size * cd.itemsize
                           + w1p.size * cd.itemsize
                           + w2p.size * cd.itemsize
                           + b1p.size * 4 + b2p.size * 4
                           + M_p * d_model_p * out_bpe))

    kernel = functools.partial(ffn_kernel, activation=activation)

    out2d = pl.pallas_call(
        kernel,
        out_shape=jax.ShapeDtypeStruct((M_p, d_model_p), out_dtype),
        grid_spec=pltpu.PrefetchScalarGridSpec(
            num_scalar_prefetch=0,
            grid=grid,
            in_specs=[
                pl.BlockSpec((TM, d_model_p), lambda i, j: (i, 0)),  # x rows
                pl.BlockSpec((TF, d_model_p), lambda i, j: (j, 0)),  # w1 rows (d_ff tile)
                pl.BlockSpec((1, TF),         lambda i, j: (0, j)),  # b1 tile
                pl.BlockSpec((d_model_p, TF), lambda i, j: (0, j)),  # w2 cols (d_ff tile)
                pl.BlockSpec((1, d_model_p),  lambda i, j: (0, 0)),  # b2 (resident)
            ],
            out_specs=pl.BlockSpec((TM, d_model_p), lambda i, j: (i, 0)),
            scratch_shapes=[pltpu.VMEM((TM, d_model_p), jnp.float32)],
        ),
        compiler_params=pltpu.CompilerParams(
            dimension_semantics=("parallel", "arbitrary"), **cp_kwargs),
        cost_estimate=cost,
    )(x2d, w1p, b1p, w2p, b2p)

    return out2d[:M, :d_model].reshape(batch, seq, d_model)


# ---------------------------------------------------------------------------
# Deterministic parameter init (xavier_uniform weights, zero biases)
# ---------------------------------------------------------------------------
def xavier_uniform(key, fan_out, fan_in, dtype=jnp.float32):
    limit = (6.0 / (fan_in + fan_out)) ** 0.5
    return jax.random.uniform(key, (fan_out, fan_in), dtype=dtype,
                              minval=-limit, maxval=limit)


if __name__ == "__main__":
    # Small shapes implied by the module: config.d_model, config.d_ff
    batch, seq, d_model, d_ff = 2, 8, 32, 64

    key = jax.random.PRNGKey(0)
    kx, kw1, kw2 = jax.random.split(key, 3)

    x = jax.random.normal(kx, (batch, seq, d_model), dtype=jnp.float32)

    w1 = xavier_uniform(kw1, d_ff, d_model)      # nn.Linear(d_model, d_ff).weight
    b1 = jnp.zeros((d_ff,), dtype=jnp.float32)
    w2 = xavier_uniform(kw2, d_model, d_ff)      # nn.Linear(d_ff, d_model).weight
    b2 = jnp.zeros((d_model,), dtype=jnp.float32)

    out = feed_forward(x, w1, b1, w2, b2, activation="ReLU")
    out = jax.block_until_ready(out)

    # Pure-JAX f32 reference; kernel computes in bf16 with f32 accumulation,
    # so use a tolerance appropriate for bf16 operands.
    ref = jnp.maximum(x @ w1.T + b1, 0.0) @ w2.T + b2
    assert out.shape == (batch, seq, d_model)
    assert jnp.allclose(out, ref, atol=5e-2, rtol=5e-2), "mismatch vs reference"

    print("KERNEL_OK")
</pallas_src>

<mosaic_0001>
module attributes {stable_mosaic.version = 11 : i64} {
  func.func @ffn_kernel(%arg0: i32, %arg1: i32, %arg2: memref<16x128xbf16, #tpu.memory_space<vmem>>, %arg3: memref<128x128xbf16, #tpu.memory_space<vmem>>, %arg4: memref<1x128xf32, #tpu.memory_space<vmem>>, %arg5: memref<128x128xbf16, #tpu.memory_space<vmem>>, %arg6: memref<1x128xf32, #tpu.memory_space<vmem>>, %arg7: memref<16x128xf32, #tpu.memory_space<vmem>>, %arg8: memref<16x128xf32, #tpu.memory_space<vmem>>) attributes {dimension_semantics = [#tpu.dimension_semantics<parallel>, #tpu.dimension_semantics<arbitrary>], iteration_bounds = array<i64: 1, 1>, scalar_prefetch = 0 : i64, scratch_operands = 1 : i64, tpu.core_type = #tpu.core_type<tc>, window_params = [{transform_indices = @transform_0, window_bounds = array<i64: 16, 128>}, {transform_indices = @transform_1, window_bounds = array<i64: 128, 128>}, {transform_indices = @transform_2, window_bounds = array<i64: 1, 128>}, {transform_indices = @transform_3, window_bounds = array<i64: 128, 128>}, {pipeline_mode = #tpu.pipeline_mode<synchronous>, transform_indices = @transform_4, window_bounds = array<i64: 1, 128>}, {transform_indices = @transform_5, window_bounds = array<i64: 16, 128>}]} {
    %c0_i32 = arith.constant 0 : i32
    %0 = arith.cmpi eq, %arg1, %c0_i32 : i32
    %1 = arith.extui %0 : i1 to i32
    %c0_i32_0 = arith.constant 0 : i32
    %2 = arith.cmpi ne, %1, %c0_i32_0 : i32
    scf.if %2 {
      %c0_16 = arith.constant 0 : index
      %c0_17 = arith.constant 0 : index
      %20 = vector.load %arg6[%c0_16, %c0_17] : memref<1x128xf32, #tpu.memory_space<vmem>>, vector<1x128xf32>
      %21 = vector.shape_cast %20 : vector<1x128xf32> to vector<1x128xf32>
      %22 = vector.broadcast %21 : vector<1x128xf32> to vector<16x128xf32>
      %c0_18 = arith.constant 0 : index
      %c0_19 = arith.constant 0 : index
      %23 = vector.load %arg8[%c0_18, %c0_19] : memref<16x128xf32, #tpu.memory_space<vmem>>, vector<16x128xf32>
      tpu.vector_store %arg8[%c0_18, %c0_19], %22 {strides = array<i32>} : memref<16x128xf32, #tpu.memory_space<vmem>>, vector<16x128xf32>,
    } else {
    }
    %c0 = arith.constant 0 : index
    %c0_1 = arith.constant 0 : index
    %3 = vector.load %arg2[%c0, %c0_1] : memref<16x128xbf16, #tpu.memory_space<vmem>>, vector<16x128xbf16>
    %c0_2 = arith.constant 0 : index
    %c0_3 = arith.constant 0 : index
    %4 = vector.load %arg3[%c0_2, %c0_3] : memref<128x128xbf16, #tpu.memory_space<vmem>>, vector<128x128xbf16>
    %cst = arith.constant dense<0.000000e+00> : vector<16x128xf32>
    %5 = tpu.matmul %3, %4, %cst {dimension_numbers = #tpu.dot_dimension_numbers<[1], [1], [0], [0], [0, 0, 1, 0], [], []>} : vector<16x128xbf16>, vector<128x128xbf16>, vector<16x128xf32> -> vector<16x128xf32>
    %c0_4 = arith.constant 0 : index
    %c0_5 = arith.constant 0 : index
    %6 = vector.load %arg4[%c0_4, %c0_5] : memref<1x128xf32, #tpu.memory_space<vmem>>, vector<1x128xf32>
    %7 = vector.broadcast %6 : vector<1x128xf32> to vector<16x128xf32>
    %8 = arith.addf %5, %7 : vector<16x128xf32>
    %cst_6 = arith.constant 0.000000e+00 : f32
    %9 = vector.broadcast %cst_6 : f32 to vector<16x128xf32>
    %10 = arith.maximumf %8, %9 : vector<16x128xf32>
    %c0_7 = arith.constant 0 : index
    %c0_8 = arith.constant 0 : index
    %11 = vector.load %arg8[%c0_7, %c0_8] : memref<16x128xf32, #tpu.memory_space<vmem>>, vector<16x128xf32>
    %12 = arith.truncf %10 : vector<16x128xf32> to vector<16x128xbf16>
    %c0_9 = arith.constant 0 : index
    %c0_10 = arith.constant 0 : index
    %13 = vector.load %arg5[%c0_9, %c0_10] : memref<128x128xbf16, #tpu.memory_space<vmem>>, vector<128x128xbf16>
    %cst_11 = arith.constant dense<0.000000e+00> : vector<16x128xf32>
    %14 = tpu.matmul %12, %13, %cst_11 {dimension_numbers = #tpu.dot_dimension_numbers<[1], [1], [0], [0], [0, 0, 1, 0], [], []>} : vector<16x128xbf16>, vector<128x128xbf16>, vector<16x128xf32> -> vector<16x128xf32>
    %15 = arith.addf %11, %14 : vector<16x128xf32>
    %c0_12 = arith.constant 0 : index
    %c0_13 = arith.constant 0 : index
    %16 = vector.load %arg8[%c0_12, %c0_13] : memref<16x128xf32, #tpu.memory_space<vmem>>, vector<16x128xf32>
    tpu.vector_store %arg8[%c0_12, %c0_13], %15 {strides = array<i32>} : memref<16x128xf32, #tpu.memory_space<vmem>>, vector<16x128xf32>,
    %c0_i32_14 = arith.constant 0 : i32
    %17 = arith.cmpi eq, %arg1, %c0_i32_14 : i32
    %18 = arith.extui %17 : i1 to i32
    %c0_i32_15 = arith.constant 0 : i32
    %19 = arith.cmpi ne, %18, %c0_i32_15 : i32
    scf.if %19 {
      %c0_16 = arith.constant 0 : index
      %c0_17 = arith.constant 0 : index
      %20 = vector.load %arg8[%c0_16, %c0_17] : memref<16x128xf32, #tpu.memory_space<vmem>>, vector<16x128xf32>
      %c0_18 = arith.constant 0 : index
      %c0_19 = arith.constant 0 : index
      %21 = vector.load %arg7[%c0_18, %c0_19] : memref<16x128xf32, #tpu.memory_space<vmem>>, vector<16x128xf32>
      tpu.vector_store %arg7[%c0_18, %c0_19], %20 {strides = array<i32>} : memref<16x128xf32, #tpu.memory_space<vmem>>, vector<16x128xf32>,
    } else {
    }
    return
  }
  func.func @transform_0(%arg0: i32, %arg1: i32) -> (i32, i32) {
    %c0_i32 = arith.constant 0 : i32
    %c0_i32_0 = arith.constant 0 : i32
    return %arg0, %c0_i32 : i32, i32
  }
  func.func @transform_1(%arg0: i32, %arg1: i32) -> (i32, i32) {
    %c0_i32 = arith.constant 0 : i32
    %c0_i32_0 = arith.constant 0 : i32
    return %arg1, %c0_i32 : i32, i32
  }
  func.func @transform_2(%arg0: i32, %arg1: i32) -> (i32, i32) {
    %c0_i32 = arith.constant 0 : i32
    %c0_i32_0 = arith.constant 0 : i32
    return %c0_i32, %arg1 : i32, i32
  }
  func.func @transform_3(%arg0: i32, %arg1: i32) -> (i32, i32) {
    %c0_i32 = arith.constant 0 : i32
    %c0_i32_0 = arith.constant 0 : i32
    return %c0_i32, %arg1 : i32, i32
  }
  func.func @transform_4(%arg0: i32, %arg1: i32) -> (i32, i32) {
    %c0_i32 = arith.constant 0 : i32
    %c0_i32_0 = arith.constant 0 : i32
    %c0_i32_1 = arith.constant 0 : i32
    return %c0_i32, %c0_i32_0 : i32, i32
  }
  func.func @transform_5(%arg0: i32, %arg1: i32) -> (i32, i32) {
    %c0_i32 = arith.constant 0 : i32
    %c0_i32_0 = arith.constant 0 : i32
    return %arg0, %c0_i32 : i32, i32
  }
}

</mosaic_0001>

<llo_original>
// kernel: tpu_custom_call.1
$region0: #{tpu_custom_call.1}
  #allocation0 [shape = 'u32[]', space=smem, size = 0x4, offset = 0x4, fixed_abs, tag = 'smem constant byte address 0x4 - core index']
  #allocation1 [shape = 'u32[144,128]{1,0:T(1,128)}', space=vmem, size = 0x12000, scoped, tag = 'internal scratch']
  #allocation2 [shape = 'f32[16,128]{1,0:T(8,128)}', space=vmem, size = 0x2000, scoped, tag = 'scratch operand']
  %s0 = inlined_call_operand.hbm [shape: bf16[16,128], index: 0, kind: input, shape index: {}]
  %s1 = inlined_call_operand.hbm [shape: bf16[128,128], index: 1, kind: input, shape index: {}]
  %s2 = inlined_call_operand.vmem [shape: f32[1,128], index: 2, kind: input, shape index: {}]
  %s3 = inlined_call_operand.hbm [shape: bf16[128,128], index: 3, kind: input, shape index: {}]
  %s4 = inlined_call_operand.vmem [shape: f32[1,128], index: 4, kind: input, shape index: {}]
  %s5 = inlined_call_operand.hbm [shape: f32[16,128], index: 5, kind: output, shape index: {}]
  %s6 = sld [smem:[#allocation0]]
  $region50: #{tpu_custom_call.1} parent=0
    _
  %s8 = ssub.s32 1, %s6
  %s9 = scalar_select 0, %s8, %s6
  $region1: #{tpu_custom_call.1} parent=0
    #allocation3 [shape = 'u8[4096]{0}', space=vmem, size = 0x1000, scoped, tag = 'input window, operand 0, single buffered']
    #allocation4 [shape = 's32[1]{0}', space=sflag, size = 0x4, scoped, tag = 'scoped memory for tpu_custom_call.1']
    #allocation5 [shape = 's32[1]{0}', space=sflag, size = 0x4, scoped, tag = 'scoped memory for tpu_custom_call.1']
    #allocation6 [shape = 'u8[32768]{0}', space=vmem, size = 0x8000, scoped, tag = 'input window, operand 1, single buffered']
    #allocation7 [shape = 's32[1]{0}', space=sflag, size = 0x4, scoped, tag = 'scoped memory for tpu_custom_call.1']
    #allocation8 [shape = 'u8[32768]{0}', space=vmem, size = 0x8000, scoped, tag = 'input window, operand 3, single buffered']
    #allocation9 [shape = 'u8[8192]{0}', space=vmem, size = 0x2000, scoped, tag = 'output window, operand 0, single buffered']
    %10 = vsyncpa [#allocation4], 0
    %11 = vsyncpa [#allocation7], 0
    %12 = vsyncpa [#allocation5], 0
    // Predicated region
    $region2: #{tpu_custom_call.1} parent=1 // pred_check
      _
    $region3: #{tpu_custom_call.1} parent=1 // pred_check_branch
      %14 = sbr.rel (0) target = $region5
    $region4: #{tpu_custom_call.1} parent=1 // pred_region
      %s16 = ssub.s32 128, 128
      %17 = vsyncadd [#allocation4], %s16
      %s18 = sshll.u32 [#allocation3], 4
      %s19 = int_to_ptr.vmem [resolvable:$true] %s18
      %24 = dma.hbm_to_vmem [thread:$0]  %s0, 128, %s19, [#allocation4], 64, 64, 4
    $region5: #{tpu_custom_call.1} parent=1 // pred_fallthru
      _
    // Predicated region
    $region6: #{tpu_custom_call.1} parent=1 // pred_check
      _
    $region7: #{tpu_custom_call.1} parent=1 // pred_check_branch
      %26 = sbr.rel (0) target = $region9
    $region8: #{tpu_custom_call.1} parent=1 // pred_region
      %s28 = ssub.s32 1024, 1024
      %29 = vsyncadd [#allocation7], %s28
      %s30 = sshll.u32 [#allocation6], 4
      %s31 = int_to_ptr.vmem [resolvable:$true] %s30
      %36 = dma.hbm_to_vmem [thread:$0]  %s1, 1024, %s31, [#allocation7], 64, 64, 4
    $region9: #{tpu_custom_call.1} parent=1 // pred_fallthru
      _
    // Predicated region
    $region10: #{tpu_custom_call.1} parent=1 // pred_check
      _
    $region11: #{tpu_custom_call.1} parent=1 // pred_check_branch
      %38 = sbr.rel (0) target = $region13
    $region12: #{tpu_custom_call.1} parent=1 // pred_region
      _
    $region13: #{tpu_custom_call.1} parent=1 // pred_fallthru
      _
    // Predicated region
    $region14: #{tpu_custom_call.1} parent=1 // pred_check
      _
    $region15: #{tpu_custom_call.1} parent=1 // pred_check_branch
      %40 = sbr.rel (0) target = $region17
    $region16: #{tpu_custom_call.1} parent=1 // pred_region
      %s42 = ssub.s32 1024, 1024
      %43 = vsyncadd [#allocation7], %s42
      %s44 = sshll.u32 [#allocation8], 4
      %s45 = int_to_ptr.vmem [resolvable:$true] %s44
      %50 = dma.hbm_to_vmem [thread:$0]  %s3, 1024, %s45, [#allocation7], 64, 64, 4
    $region17: #{tpu_custom_call.1} parent=1 // pred_fallthru
      _
    // Predicated region
    $region18: #{tpu_custom_call.1} parent=1 // pred_check
      _
    $region19: #{tpu_custom_call.1} parent=1 // pred_check_branch
      %52 = sbr.rel (0) target = $region21
    $region20: #{tpu_custom_call.1} parent=1 // pred_region
      _
    $region21: #{tpu_custom_call.1} parent=1 // pred_fallthru
      _
    // Predicated region
    $region22: #{tpu_custom_call.1} parent=1 // pred_check
      _
    $region23: #{tpu_custom_call.1} parent=1 // pred_check_branch
      %54 = sbr.rel (0) target = $region25
    $region24: #{tpu_custom_call.1} parent=1 // pred_region
      %55 = dma.done [#allocation4], 128
    $region25: #{tpu_custom_call.1} parent=1 // pred_fallthru
      _
    // Predicated region
    $region26: #{tpu_custom_call.1} parent=1 // pred_check
      _
    $region27: #{tpu_custom_call.1} parent=1 // pred_check_branch
      %57 = sbr.rel (0) target = $region29
    $region28: #{tpu_custom_call.1} parent=1 // pred_region
      %58 = dma.done [#allocation7], 1024
    $region29: #{tpu_custom_call.1} parent=1 // pred_fallthru
      _
    // Predicated region
    $region30: #{tpu_custom_call.1} parent=1 // pred_check
      _
    $region31: #{tpu_custom_call.1} parent=1 // pred_check_branch
      %60 = sbr.rel (0) target = $region33
    $region32: #{tpu_custom_call.1} parent=1 // pred_region
      %61 = dma.done [#allocation7], 1024
    $region33: #{tpu_custom_call.1} parent=1 // pred_fallthru
      _
    %p63 = scmp.eq.s32.totalorder 0, 0
    // Predicated region
    $region34: #{tpu_custom_call.1} parent=1 // pred_check
      %p64 = pneg %p63
    $region35: #{tpu_custom_call.1} parent=1 // pred_check_branch
      %66 = sbr.rel (%p64) target = $region37
    $region36: #{tpu_custom_call.1} parent=1 // pred_region
      %v67 = vld [vmem:[%s4] sm:$0x1]
      %v69 = vlaneseq
      %v70 = vshrl.u32 %v69, 7
      %v71 = vsub.s32 0, %v70
      %v72 = vrot.slane %v67, %v71
      %74 = vst [vmem:[#allocation2] sm:$0xff] %v72
      %75 = vst [vmem:[#allocation2 + $0x8] sm:$0xff] %v72
    $region37: #{tpu_custom_call.1} parent=1 // pred_fallthru
      _
    %v76 = vld [vmem:[#allocation3] sm:$0xf]
    %v77 = vld [vmem:[#allocation3 + $0x4] sm:$0xf]
    %v78 = vld [vmem:[#allocation6] sm:$0xf]
    %v79 = vld [vmem:[#allocation6 + $0x4] sm:$0xf]
    %v80 = vld [vmem:[#allocation6 + $0x8] sm:$0xf]
    %v81 = vld [vmem:[#allocation6 + $0xc] sm:$0xf]
    %v82 = vld [vmem:[#allocation6 + $0x10] sm:$0xf]
    %v83 = vld [vmem:[#allocation6 + $0x14] sm:$0xf]
    %v84 = vld [vmem:[#allocation6 + $0x18] sm:$0xf]
    %v85 = vld [vmem:[#allocation6 + $0x1c] sm:$0xf]
    %v86 = vld [vmem:[#allocation6 + $0x20] sm:$0xf]
    %v87 = vld [vmem:[#allocation6 + $0x24] sm:$0xf]
    %v88 = vld [vmem:[#allocation6 + $0x28] sm:$0xf]
    %v89 = vld [vmem:[#allocation6 + $0x2c] sm:$0xf]
    %v90 = vld [vmem:[#allocation6 + $0x30] sm:$0xf]
    %v91 = vld [vmem:[#allocation6 + $0x34] sm:$0xf]
    %v92 = vld [vmem:[#allocation6 + $0x38] sm:$0xf]
    %v93 = vld [vmem:[#allocation6 + $0x3c] sm:$0xf]
    %v94 = vld [vmem:[%s2] sm:$0x1]
    %v96 = vlaneseq
    %v97 = vshrl.u32 %v96, 7
    %v98 = vsub.s32 0, %v97
    %v99 = vrot.slane %v94, %v98
    %v103 = vunpack.c.l.b16 %v76
    %v104 = vunpack.c.l.b16 %v77
    %v105 = vpack.c.b16 %v104, %v103
    %v123 = vunpack.c.l.b16 %v78
    %v124 = vunpack.c.l.b16 %v79
    %v125 = vunpack.c.l.b16 %v80
    %v126 = vunpack.c.l.b16 %v81
    %v127 = vunpack.c.l.b16 %v82
    %v128 = vunpack.c.l.b16 %v83
    %v129 = vunpack.c.l.b16 %v84
    %v130 = vunpack.c.l.b16 %v85
    %v131 = vunpack.c.l.b16 %v86
    %v132 = vunpack.c.l.b16 %v87
    %v133 = vunpack.c.l.b16 %v88
    %v134 = vunpack.c.l.b16 %v89
    %v135 = vunpack.c.l.b16 %v90
    %v136 = vunpack.c.l.b16 %v91
    %v137 = vunpack.c.l.b16 %v92
    %v138 = vunpack.c.l.b16 %v93
    %v139 = vpack.c.b16 %v124, %v123
    %v140 = vpack.c.b16 %v126, %v125
    %v141 = vpack.c.b16 %v128, %v127
    %v142 = vpack.c.b16 %v130, %v129
    %v143 = vpack.c.b16 %v132, %v131
    %v144 = vpack.c.b16 %v134, %v133
    %v145 = vpack.c.b16 %v136, %v135
    %v146 = vpack.c.b16 %v138, %v137
    %155 = vmatprep.subr.bf16.mxu0 0
    %156 = vmatpush1.bf16.xpose.msra.mxu0 %v139
    %157 = vmatprep.subr.bf16.mxu0 0
    %158 = vmatpush1.bf16.xpose.msra.mxu0 %v140
    %159 = vmatprep.subr.bf16.mxu0 0
    %160 = vmatpush1.bf16.xpose.msra.mxu0 %v141
    %161 = vmatprep.subr.bf16.mxu0 0
    %162 = vmatpush1.bf16.xpose.msra.mxu0 %v142
    %163 = vmatprep.subr.bf16.mxu0 0
    %164 = vmatpush1.bf16.xpose.msra.mxu0 %v143
    %165 = vmatprep.subr.bf16.mxu0 0
    %166 = vmatpush1.bf16.xpose.msra.mxu0 %v144
    %167 = vmatprep.subr.bf16.mxu0 0
    %168 = vmatpush1.bf16.xpose.msra.mxu0 %v145
    %169 = vmatprep.subr.bf16.mxu0 0
    %170 = vmatpush1.bf16.xpose.msra.mxu0 %v146
    %171 = vmatprep.subr.bf16.mxu0 0
    %172 = vmatpush1.bf16.xpose.msra.mxu0 0
    %173 = vmatprep.subr.bf16.mxu0 0
    %174 = vmatpush1.bf16.xpose.msra.mxu0 0
    %175 = vmatprep.subr.bf16.mxu0 0
    %176 = vmatpush1.bf16.xpose.msra.mxu0 0
    %177 = vmatprep.subr.bf16.mxu0 0
    %178 = vmatpush1.bf16.xpose.msra.mxu0 0
    %179 = vmatprep.subr.bf16.mxu0 0
    %180 = vmatpush1.bf16.xpose.msra.mxu0 0
    %181 = vmatprep.subr.bf16.mxu0 0
    %182 = vmatpush1.bf16.xpose.msra.mxu0 0
    %183 = vmatprep.subr.bf16.mxu0 0
    %184 = vmatpush1.bf16.xpose.msra.mxu0 0
    %185 = vmatprep.subr.bf16.mxu0 0
    %186 = vmatpush1.bf16.xpose.msra.mxu0 0
    %187 = vmatprep.mubr.bf16.mxu0 0
    %188 = vmatmul.mubr.bf16.gmra.mrb[0].mxu0 %v105
    %v189 = vpop.f32.mrb[0].mxu0
    %v190 = vadd.f32 %v99, %v189
    %v191 = vpop.f32.mrb[0].mxu0
    %v192 = vpop.f32.mrb[0].mxu0
    %v193 = vadd.f32 %v99, %v192
    %v194 = vpop.f32.mrb[0].mxu0
    %195 = vdwg.mxu0
    %v196 = vmax.f32 %v190, 0.0
    %v197 = vmax.f32 %v193, 0.0
    %v198 = vld [vmem:[#allocation2] sm:$0xff]
    %v199 = vld [vmem:[#allocation2 + $0x8] sm:$0xff]
    %v200 = vpack.c.bf16 %v197, %v196
    %v201 = vld [vmem:[#allocation8] sm:$0xf]
    %v202 = vld [vmem:[#allocation8 + $0x4] sm:$0xf]
    %v203 = vld [vmem:[#allocation8 + $0x8] sm:$0xf]
    %v204 = vld [vmem:[#allocation8 + $0xc] sm:$0xf]
    %v205 = vld [vmem:[#allocation8 + $0x10] sm:$0xf]
    %v206 = vld [vmem:[#allocation8 + $0x14] sm:$0xf]
    %v207 = vld [vmem:[#allocation8 + $0x18] sm:$0xf]
    %v208 = vld [vmem:[#allocation8 + $0x1c] sm:$0xf]
    %v209 = vld [vmem:[#allocation8 + $0x20] sm:$0xf]
    %v210 = vld [vmem:[#allocation8 + $0x24] sm:$0xf]
    %v211 = vld [vmem:[#allocation8 + $0x28] sm:$0xf]
    %v212 = vld [vmem:[#allocation8 + $0x2c] sm:$0xf]
    %v213 = vld [vmem:[#allocation8 + $0x30] sm:$0xf]
    %v214 = vld [vmem:[#allocation8 + $0x34] sm:$0xf]
    %v215 = vld [vmem:[#allocation8 + $0x38] sm:$0xf]
    %v216 = vld [vmem:[#allocation8 + $0x3c] sm:$0xf]
    %v233 = vunpack.c.l.b16 %v201
    %v234 = vunpack.c.l.b16 %v202
    %v235 = vunpack.c.l.b16 %v203
    %v236 = vunpack.c.l.b16 %v204
    %v237 = vunpack.c.l.b16 %v205
    %v238 = vunpack.c.l.b16 %v206
    %v239 = vunpack.c.l.b16 %v207
    %v240 = vunpack.c.l.b16 %v208
    %v241 = vunpack.c.l.b16 %v209
    %v242 = vunpack.c.l.b16 %v210
    %v243 = vunpack.c.l.b16 %v211
    %v244 = vunpack.c.l.b16 %v212
    %v245 = vunpack.c.l.b16 %v213
    %v246 = vunpack.c.l.b16 %v214
    %v247 = vunpack.c.l.b16 %v215
    %v248 = vunpack.c.l.b16 %v216
    %v249 = vpack.c.b16 %v234, %v233
    %v250 = vpack.c.b16 %v236, %v235
    %v251 = vpack.c.b16 %v238, %v237
    %v252 = vpack.c.b16 %v240, %v239
    %v253 = vpack.c.b16 %v242, %v241
    %v254 = vpack.c.b16 %v244, %v243
    %v255 = vpack.c.b16 %v246, %v245
    %v256 = vpack.c.b16 %v248, %v247
    %265 = vmatprep.subr.bf16.mxu0 0
    %266 = vmatpush1.bf16.xpose.msra.mxu0 %v249
    %267 = vmatprep.subr.bf16.mxu0 0
    %268 = vmatpush1.bf16.xpose.msra.mxu0 %v250
    %269 = vmatprep.subr.bf16.mxu0 0
    %270 = vmatpush1.bf16.xpose.msra.mxu0 %v251
    %271 = vmatprep.subr.bf16.mxu0 0
    %272 = vmatpush1.bf16.xpose.msra.mxu0 %v252
    %273 = vmatprep.subr.bf16.mxu0 0
    %274 = vmatpush1.bf16.xpose.msra.mxu0 %v253
    %275 = vmatprep.subr.bf16.mxu0 0
    %276 = vmatpush1.bf16.xpose.msra.mxu0 %v254
    %277 = vmatprep.subr.bf16.mxu0 0
    %278 = vmatpush1.bf16.xpose.msra.mxu0 %v255
    %279 = vmatprep.subr.bf16.mxu0 0
    %280 = vmatpush1.bf16.xpose.msra.mxu0 %v256
    %281 = vmatprep.subr.bf16.mxu0 0
    %282 = vmatpush1.bf16.xpose.msra.mxu0 0
    %283 = vmatprep.subr.bf16.mxu0 0
    %284 = vmatpush1.bf16.xpose.msra.mxu0 0
    %285 = vmatprep.subr.bf16.mxu0 0
    %286 = vmatpush1.bf16.xpose.msra.mxu0 0
    %287 = vmatprep.subr.bf16.mxu0 0
    %288 = vmatpush1.bf16.xpose.msra.mxu0 0
    %289 = vmatprep.subr.bf16.mxu0 0
    %290 = vmatpush1.bf16.xpose.msra.mxu0 0
    %291 = vmatprep.subr.bf16.mxu0 0
    %292 = vmatpush1.bf16.xpose.msra.mxu0 0
    %293 = vmatprep.subr.bf16.mxu0 0
    %294 = vmatpush1.bf16.xpose.msra.mxu0 0
    %295 = vmatprep.subr.bf16.mxu0 0
    %296 = vmatpush1.bf16.xpose.msra.mxu0 0
    %297 = vmatprep.mubr.bf16.mxu0 0
    %298 = vmatmul.mubr.bf16.gmra.mrb[0].mxu0 %v200
    %v299 = vpop.f32.mrb[0].mxu0
    %v300 = vadd.f32 0.0, %v299
    %v301 = vpop.f32.mrb[0].mxu0
    %v302 = vpop.f32.mrb[0].mxu0
    %v303 = vadd.f32 0.0, %v302
    %v304 = vpop.f32.mrb[0].mxu0
    %305 = vdwg.mxu0
    %v306 = vadd.f32 %v198, %v300
    %v307 = vadd.f32 %v199, %v303
    %308 = vst [vmem:[#allocation2] sm:$0xff] %v306
    %309 = vst [vmem:[#allocation2 + $0x8] sm:$0xff] %v307
    // Predicated region
    $region38: #{tpu_custom_call.1} parent=1 // pred_check
      %p310 = pneg %p63
    $region39: #{tpu_custom_call.1} parent=1 // pred_check_branch
      %312 = sbr.rel (%p310) target = $region41
    $region40: #{tpu_custom_call.1} parent=1 // pred_region
      %v313 = vld [vmem:[#allocation2] sm:$0xff]
      %v314 = vld [vmem:[#allocation2 + $0x8] sm:$0xff]
      %315 = vst [vmem:[#allocation9] sm:$0xff] %v313
      %316 = vst [vmem:[#allocation9 + $0x8] sm:$0xff] %v314
    $region41: #{tpu_custom_call.1} parent=1 // pred_fallthru
      _
    // Predicated region
    $region42: #{tpu_custom_call.1} parent=1 // pred_check
      _
    $region43: #{tpu_custom_call.1} parent=1 // pred_check_branch
      %318 = sbr.rel (0) target = $region45
    $region44: #{tpu_custom_call.1} parent=1 // pred_region
      %s320 = ssub.s32 256, 256
      %321 = vsyncadd [#allocation5], %s320
      %s322 = sshll.u32 [#allocation9], 4
      %s323 = int_to_ptr.vmem [resolvable:$true] %s322
      %328 = dma.vmem_to_hbm [thread:$0]  %s323, 256, %s5, [#allocation5], 128, 128, 8
    $region45: #{tpu_custom_call.1} parent=1 // pred_fallthru
      _
    // Predicated region
    $region46: #{tpu_custom_call.1} parent=1 // pred_check
      _
    $region47: #{tpu_custom_call.1} parent=1 // pred_check_branch
      %330 = sbr.rel (0) target = $region49
    $region48: #{tpu_custom_call.1} parent=1 // pred_region
      %331 = dma.done [#allocation5], 256
    $region49: #{tpu_custom_call.1} parent=1 // pred_fallthru
      _
    %332 = vsyncpa [#allocation4], 1
    %333 = vsyncpa [#allocation7], 1
    %334 = vsyncpa [#allocation5], 1

</llo_original>
